<compile_context>
chip_gen: v7x
topology: tpu7x:2x2x1
jax: 0.10.0
libtpu: 0.0.40
codegen_flags: <defaults>
</compile_context>

<pallas_src>
import jax
import jax.numpy as jnp
from jax.experimental import pallas as pl
from jax.experimental.pallas import tpu as pltpu


def value_head_kernel(x_ref, cw_ref, cb_ref, w1_ref, b1_ref, w2_ref, b2_ref,
                      o_ref):
    # x_ref : (TB, C, P) f32 VMEM           cw/cb/b2 : SMEM scalars
    # w1_ref: (P, H_pad) bf16 VMEM          b1/w2    : (1, H_pad) f32 VMEM
    # o_ref : (TB, 128) f32 VMEM (lane-dense; column 0 is the real output)
    C = x_ref.shape[1]

    # Folded 1x1 conv + eval-mode BN: per-channel SMEM-scalar * slab FMAs on
    # dense (TB, P) register slabs (pure VPU for small C).
    # TODO(synk): for C >= ~64 route this through the MXU / strip-mine P so
    # the accumulator never spills (per perf review); irrelevant at C=4.
    v = x_ref[:, 0, :] * cw_ref[0]
    for c in range(1, C):
        v = v + x_ref[:, c, :] * cw_ref[c]
    v = jnp.maximum(v + cb_ref[0], 0.0)                       # bias + ReLU

    # Flatten(1) is just the (TB, P) layout.  Linear(P -> hidden) + ReLU on
    # the MXU (bf16 inputs, f32 accumulate); K = P, unpadded in HBM.
    h = jnp.dot(v.astype(jnp.bfloat16), w1_ref[...],
                preferred_element_type=jnp.float32) + b1_ref[...]
    h = jnp.maximum(h, 0.0)

    # Linear(hidden -> 1) + Tanh: VPU multiply + lane reduce (an N=1 MXU
    # matmul would waste all but one result column).
    out = jnp.sum(h * w2_ref[...], axis=-1, keepdims=True) + b2_ref[0]
    out = jnp.tanh(out)                                       # (TB, 1)

    # Lane-dense, unmasked store; wrapper reads column 0.
    o_ref[...] = jnp.broadcast_to(out, o_ref.shape)


def _round_up(x, m):
    return pl.cdiv(x, m) * m


def _vmem_capacity_bytes():
    try:
        cap = getattr(pltpu.get_tpu_info(), "vmem_capacity_bytes", None)
        if cap:
            return int(cap)
    except Exception:
        pass
    return 64 << 20  # conservative fallback (v7x per-TensorCore VMEM)


def value_head(x_nchw, params):
    """x_nchw: (B, C, H, W) float32 -> (B, 1) float32."""
    B, C, H, W = x_nchw.shape
    P = H * W
    hidden = params["w1"].shape[1]
    eps = 1e-5

    # ---- Fold eval-mode BatchNorm2d(1) + conv bias into the 1x1 conv ------
    gamma, beta, mean, var = (params["bn"][0, i] for i in range(4))
    scale = gamma * jax.lax.rsqrt(var + eps)
    cw = (params["cw"][0] * scale).astype(jnp.float32)            # (C,)
    cb = ((params["cb"][0, 0] - mean) * scale + beta).reshape(1)  # (1,)

    # ---- Small weights only: pad hidden to a lane-dense multiple of 128 ---
    H_pad = _round_up(hidden, 128)
    w1 = jnp.pad(params["w1"],
                 ((0, 0), (0, H_pad - hidden))).astype(jnp.bfloat16)
    b1 = jnp.pad(params["b1"], ((0, 0), (0, H_pad - hidden)))    # (1, H_pad)
    w2 = jnp.pad(params["w2"][:, 0], (0, H_pad - hidden)).reshape(1, H_pad)
    b2 = params["b2"].reshape(1)                                 # (1,)

    # ---- x stays in its native layout: (B,C,H,W) -> (B,C,P) is a metadata-
    #      only reshape; no transpose / pad passes over x in HBM. -----------
    x = x_nchw.reshape(B, C, P)

    # ---- Batch tile: per-generation budget from real VMEM capacity;
    #      cap at ceil(B/2) so the grid has >= 2 tiles (v7x megacore) when
    #      the batch allows, which also bounds ragged-tile waste. -----------
    vmem_cap = _vmem_capacity_bytes()
    x_budget = vmem_cap // 3                 # x double-buffer share of VMEM
    C_sub = _round_up(C, 8)                  # sublane padding inside VMEM
    P_lane = _round_up(P, 128)               # lane padding inside VMEM
    if B <= 8:
        TB = B                               # exact fit, single tile
    else:
        TB = 8
        while (TB * 2 <= 1024
               and 2 * (TB * 2) * C_sub * P_lane * 4 <= x_budget
               and TB * 2 <= max(8, pl.cdiv(B, 2))):
            TB *= 2
    num_tiles = pl.cdiv(B, TB)               # ragged last tile is masked

    vmem_need = (2 * TB * C_sub * P_lane * 4                  # x double buf
                 + 2 * (P_lane * H_pad * 2 + 2 * H_pad * 4)   # w1 + b1 + w2
                 + 2 * TB * 128 * 4)                          # out double buf
    vmem_limit = int(min(vmem_cap, max(vmem_need + (4 << 20), 16 << 20)))

    smem = pl.BlockSpec(memory_space=pltpu.MemorySpace.SMEM)
    out = pl.pallas_call(
        value_head_kernel,
        out_shape=jax.ShapeDtypeStruct((num_tiles * TB, 128), jnp.float32),
        grid=(num_tiles,),
        in_specs=[
            pl.BlockSpec((TB, C, P), lambda i: (i, 0, 0)),   # x: pipelined
            smem,                                            # cw (folded)
            smem,                                            # cb (folded)
            pl.BlockSpec((P, H_pad), lambda i: (0, 0)),      # w1: resident
            pl.BlockSpec((1, H_pad), lambda i: (0, 0)),      # b1: resident
            pl.BlockSpec((1, H_pad), lambda i: (0, 0)),      # w2: resident
            smem,                                            # b2
        ],
        out_specs=pl.BlockSpec((TB, 128), lambda i: (i, 0)),
        compiler_params=pltpu.CompilerParams(
            dimension_semantics=("parallel",),
            vmem_limit_bytes=vmem_limit),
    )(x, cw, cb, w1, b1, w2, b2)
    return out[:B, 0:1]


def value_head_reference(x_nchw, params):
    """Pure-JAX f32 reference (matches the PyTorch module, eval-mode BN)."""
    B, C, H, W = x_nchw.shape
    x = x_nchw.reshape(B, C, H * W)
    v = jnp.sum(x * params["cw"][0][None, :, None], axis=1) + params["cb"][0, 0]
    gamma, beta, mean, var = (params["bn"][0, i] for i in range(4))
    v = gamma * (v - mean) / jnp.sqrt(var + 1e-5) + beta
    v = jnp.maximum(v, 0.0)
    h = jnp.maximum(v @ params["w1"] + params["b1"], 0.0)
    return jnp.tanh(h @ params["w2"] + params["b2"])


def make_params(key, num_filters, board_size, hidden):
    P = board_size * board_size
    k1, k2, k3 = jax.random.split(key, 3)
    return {
        # Conv2d(num_filters, 1, kernel_size=1): weight (1, C, 1, 1) -> (1, C)
        "cw": jax.random.normal(k1, (1, num_filters), jnp.float32) * 0.1,
        "cb": jnp.full((1, 1), 0.05, jnp.float32),
        # BatchNorm2d(1): [gamma, beta, running_mean, running_var]
        "bn": jnp.array([[1.0, 0.0, 0.0, 1.0]], jnp.float32),
        # Linear(P -> hidden): stored as (in, out) so kernel does x @ W
        "w1": jax.random.normal(k2, (P, hidden), jnp.float32) * 0.05,
        "b1": jnp.full((1, hidden), 0.01, jnp.float32),
        # Linear(hidden -> 1)
        "w2": jax.random.normal(k3, (hidden, 1), jnp.float32) * 0.05,
        "b2": jnp.full((1, 1), 0.02, jnp.float32),
    }


if __name__ == "__main__":
    batch, num_filters, board_size, hidden = 2, 4, 16, 32

    key = jax.random.PRNGKey(0)
    kx, kp = jax.random.split(key)
    x = jax.random.normal(kx, (batch, num_filters, board_size, board_size),
                          jnp.float32)
    params = make_params(kp, num_filters, board_size, hidden)

    out = value_head(x, params)
    out = jax.block_until_ready(out)

    ref = value_head_reference(x, params)
    assert out.shape == (batch, 1), out.shape
    # The P->hidden matmul runs with bf16 MXU inputs (f32 accumulate), so
    # compare against the f32 reference at a bf16-appropriate tolerance.
    assert jnp.allclose(out, ref, atol=1e-2, rtol=1e-2), (out, ref)

    print("KERNEL_OK")
</pallas_src>

<mosaic_0001>
module attributes {stable_mosaic.version = 11 : i64} {
  func.func @value_head_kernel(%arg0: i32, %arg1: memref<2x4x256xf32, #tpu.memory_space<vmem>>, %arg2: memref<4xf32, #tpu.memory_space<smem>>, %arg3: memref<1xf32, #tpu.memory_space<smem>>, %arg4: memref<256x128xbf16, #tpu.memory_space<vmem>>, %arg5: memref<1x128xf32, #tpu.memory_space<vmem>>, %arg6: memref<1x128xf32, #tpu.memory_space<vmem>>, %arg7: memref<1xf32, #tpu.memory_space<smem>>, %arg8: memref<2x128xf32, #tpu.memory_space<vmem>>) attributes {dimension_semantics = [#tpu.dimension_semantics<parallel>], iteration_bounds = array<i64: 1>, scalar_prefetch = 0 : i64, scratch_operands = 0 : i64, tpu.core_type = #tpu.core_type<tc>, window_params = [{transform_indices = @transform_0, window_bounds = array<i64: 2, 4, 256>}, {transform_indices = @transform_1, window_bounds = array<i64: 4>}, {transform_indices = @transform_2, window_bounds = array<i64: 1>}, {pipeline_mode = #tpu.pipeline_mode<synchronous>, transform_indices = @transform_3, window_bounds = array<i64: 256, 128>}, {pipeline_mode = #tpu.pipeline_mode<synchronous>, transform_indices = @transform_4, window_bounds = array<i64: 1, 128>}, {pipeline_mode = #tpu.pipeline_mode<synchronous>, transform_indices = @transform_5, window_bounds = array<i64: 1, 128>}, {transform_indices = @transform_6, window_bounds = array<i64: 1>}, {transform_indices = @transform_7, window_bounds = array<i64: 2, 128>}]} {
    %c0 = arith.constant 0 : index
    %c0_0 = arith.constant 0 : index
    %c0_1 = arith.constant 0 : index
    %0 = vector.load %arg1[%c0, %c0_0, %c0_1] : memref<2x4x256xf32, #tpu.memory_space<vmem>>, vector<2x1x256xf32>
    %1 = vector.shape_cast %0 : vector<2x1x256xf32> to vector<2x256xf32>
    %c0_2 = arith.constant 0 : index
    %2 = memref.load %arg2[%c0_2] : memref<4xf32, #tpu.memory_space<smem>>
    %3 = vector.broadcast %2 : f32 to vector<2x256xf32>
    %4 = arith.mulf %1, %3 : vector<2x256xf32>
    %c0_3 = arith.constant 0 : index
    %c1 = arith.constant 1 : index
    %c0_4 = arith.constant 0 : index
    %5 = vector.load %arg1[%c0_3, %c1, %c0_4] : memref<2x4x256xf32, #tpu.memory_space<vmem>>, vector<2x1x256xf32>
    %6 = vector.shape_cast %5 : vector<2x1x256xf32> to vector<2x256xf32>
    %c1_5 = arith.constant 1 : index
    %7 = memref.load %arg2[%c1_5] : memref<4xf32, #tpu.memory_space<smem>>
    %8 = vector.broadcast %7 : f32 to vector<2x256xf32>
    %9 = arith.mulf %6, %8 : vector<2x256xf32>
    %10 = arith.addf %4, %9 : vector<2x256xf32>
    %c0_6 = arith.constant 0 : index
    %c2 = arith.constant 2 : index
    %c0_7 = arith.constant 0 : index
    %11 = vector.load %arg1[%c0_6, %c2, %c0_7] : memref<2x4x256xf32, #tpu.memory_space<vmem>>, vector<2x1x256xf32>
    %12 = vector.shape_cast %11 : vector<2x1x256xf32> to vector<2x256xf32>
    %c2_8 = arith.constant 2 : index
    %13 = memref.load %arg2[%c2_8] : memref<4xf32, #tpu.memory_space<smem>>
    %14 = vector.broadcast %13 : f32 to vector<2x256xf32>
    %15 = arith.mulf %12, %14 : vector<2x256xf32>
    %16 = arith.addf %10, %15 : vector<2x256xf32>
    %c0_9 = arith.constant 0 : index
    %c3 = arith.constant 3 : index
    %c0_10 = arith.constant 0 : index
    %17 = vector.load %arg1[%c0_9, %c3, %c0_10] : memref<2x4x256xf32, #tpu.memory_space<vmem>>, vector<2x1x256xf32>
    %18 = vector.shape_cast %17 : vector<2x1x256xf32> to vector<2x256xf32>
    %c3_11 = arith.constant 3 : index
    %19 = memref.load %arg2[%c3_11] : memref<4xf32, #tpu.memory_space<smem>>
    %20 = vector.broadcast %19 : f32 to vector<2x256xf32>
    %21 = arith.mulf %18, %20 : vector<2x256xf32>
    %22 = arith.addf %16, %21 : vector<2x256xf32>
    %c0_12 = arith.constant 0 : index
    %23 = memref.load %arg3[%c0_12] : memref<1xf32, #tpu.memory_space<smem>>
    %24 = vector.broadcast %23 : f32 to vector<2x256xf32>
    %25 = arith.addf %22, %24 : vector<2x256xf32>
    %cst = arith.constant 0.000000e+00 : f32
    %26 = vector.broadcast %cst : f32 to vector<2x256xf32>
    %27 = arith.maximumf %25, %26 : vector<2x256xf32>
    %28 = arith.truncf %27 : vector<2x256xf32> to vector<2x256xbf16>
    %c0_13 = arith.constant 0 : index
    %c0_14 = arith.constant 0 : index
    %29 = vector.load %arg4[%c0_13, %c0_14] : memref<256x128xbf16, #tpu.memory_space<vmem>>, vector<256x128xbf16>
    %cst_15 = arith.constant dense<0.000000e+00> : vector<2x128xf32>
    %30 = tpu.matmul %28, %29, %cst_15 {dimension_numbers = #tpu.dot_dimension_numbers<[1], [0], [0], [1], [0, 0, 1, 1], [], []>} : vector<2x256xbf16>, vector<256x128xbf16>, vector<2x128xf32> -> vector<2x128xf32>
    %c0_16 = arith.constant 0 : index
    %c0_17 = arith.constant 0 : index
    %31 = vector.load %arg5[%c0_16, %c0_17] : memref<1x128xf32, #tpu.memory_space<vmem>>, vector<1x128xf32>
    %32 = vector.broadcast %31 : vector<1x128xf32> to vector<2x128xf32>
    %33 = arith.addf %30, %32 : vector<2x128xf32>
    %cst_18 = arith.constant 0.000000e+00 : f32
    %34 = vector.broadcast %cst_18 : f32 to vector<2x128xf32>
    %35 = arith.maximumf %33, %34 : vector<2x128xf32>
    %c0_19 = arith.constant 0 : index
    %c0_20 = arith.constant 0 : index
    %36 = vector.load %arg6[%c0_19, %c0_20] : memref<1x128xf32, #tpu.memory_space<vmem>>, vector<1x128xf32>
    %37 = vector.broadcast %36 : vector<1x128xf32> to vector<2x128xf32>
    %38 = arith.mulf %35, %37 : vector<2x128xf32>
    %cst_21 = arith.constant dense<0.000000e+00> : vector<2xf32>
    %39 = vector.multi_reduction <add>, %38, %cst_21 [1] : vector<2x128xf32> to vector<2xf32>
    %40 = vector.shape_cast %39 : vector<2xf32> to vector<2x1xf32>
    %c0_22 = arith.constant 0 : index
    %41 = memref.load %arg7[%c0_22] : memref<1xf32, #tpu.memory_space<smem>>
    %42 = vector.broadcast %41 : f32 to vector<2x1xf32>
    %43 = arith.addf %40, %42 : vector<2x1xf32>
    %44 = math.tanh %43 : vector<2x1xf32>
    %45 = vector.shape_cast %44 : vector<2x1xf32> to vector<2x1xf32>
    %46 = vector.broadcast %45 : vector<2x1xf32> to vector<2x128xf32>
    %c0_23 = arith.constant 0 : index
    %c0_24 = arith.constant 0 : index
    %47 = vector.load %arg8[%c0_23, %c0_24] : memref<2x128xf32, #tpu.memory_space<vmem>>, vector<2x128xf32>
    tpu.vector_store %arg8[%c0_23, %c0_24], %46 {strides = array<i32>} : memref<2x128xf32, #tpu.memory_space<vmem>>, vector<2x128xf32>,
    return
  }
  func.func @transform_0(%arg0: i32) -> (i32, i32, i32) {
    %c0_i32 = arith.constant 0 : i32
    %c0_i32_0 = arith.constant 0 : i32
    %c0_i32_1 = arith.constant 0 : i32
    return %arg0, %c0_i32, %c0_i32_0 : i32, i32, i32
  }
  func.func @transform_1(%arg0: i32) -> i32 {
    %c0_i32 = arith.constant 0 : i32
    %c0_i32_0 = arith.constant 0 : i32
    return %c0_i32 : i32
  }
  func.func @transform_2(%arg0: i32) -> i32 {
    %c0_i32 = arith.constant 0 : i32
    %c0_i32_0 = arith.constant 0 : i32
    return %c0_i32 : i32
  }
  func.func @transform_3(%arg0: i32) -> (i32, i32) {
    %c0_i32 = arith.constant 0 : i32
    %c0_i32_0 = arith.constant 0 : i32
    %c0_i32_1 = arith.constant 0 : i32
    return %c0_i32, %c0_i32_0 : i32, i32
  }
  func.func @transform_4(%arg0: i32) -> (i32, i32) {
    %c0_i32 = arith.constant 0 : i32
    %c0_i32_0 = arith.constant 0 : i32
    %c0_i32_1 = arith.constant 0 : i32
    return %c0_i32, %c0_i32_0 : i32, i32
  }
  func.func @transform_5(%arg0: i32) -> (i32, i32) {
    %c0_i32 = arith.constant 0 : i32
    %c0_i32_0 = arith.constant 0 : i32
    %c0_i32_1 = arith.constant 0 : i32
    return %c0_i32, %c0_i32_0 : i32, i32
  }
  func.func @transform_6(%arg0: i32) -> i32 {
    %c0_i32 = arith.constant 0 : i32
    %c0_i32_0 = arith.constant 0 : i32
    return %c0_i32 : i32
  }
  func.func @transform_7(%arg0: i32) -> (i32, i32) {
    %c0_i32 = arith.constant 0 : i32
    %c0_i32_0 = arith.constant 0 : i32
    return %arg0, %c0_i32 : i32, i32
  }
}

</mosaic_0001>

<llo_original>
// kernel: tpu_custom_call.1
$region0: #{tpu_custom_call.1}
  #allocation0 [shape = 'u32[]', space=smem, size = 0x4, offset = 0x4, fixed_abs, tag = 'smem constant byte address 0x4 - core index']
  #allocation1 [shape = 'u32[144,128]{1,0:T(1,128)}', space=vmem, size = 0x12000, scoped, tag = 'internal scratch']
  #allocation2 [shape = 'f32[1]{0:T(128)S(6)}', space=smem, size = 0x200, scoped, tag = 'scoped memory for tpu_custom_call.1']
  #allocation3 [shape = 'f32[1]{0:T(128)S(6)}', space=smem, size = 0x200, scoped, tag = 'scoped memory for tpu_custom_call.1']
  %s0 = inlined_call_operand.hbm [shape: f32[2,4,256], index: 0, kind: input, shape index: {}]
  %s1 = inlined_call_operand.vmem [shape: f32[4], index: 1, kind: input, shape index: {}]
  %s2 = inlined_call_operand.<no memory space> [shape: f32[1], index: 2, kind: input, shape index: {}]
  %s3 = inlined_call_operand.hbm [shape: bf16[256,128], index: 3, kind: input, shape index: {}]
  %s4 = inlined_call_operand.vmem [shape: f32[1,128], index: 4, kind: input, shape index: {}]
  %s5 = inlined_call_operand.vmem [shape: f32[1,128], index: 5, kind: input, shape index: {}]
  %s6 = inlined_call_operand.<no memory space> [shape: f32[1], index: 6, kind: input, shape index: {}]
  %s7 = inlined_call_operand.hbm [shape: f32[2,128], index: 7, kind: output, shape index: {}]
  %s8 = sld [smem:[#allocation0]]
  $region50: #{tpu_custom_call.1} parent=0
    _
  %s10 = ssub.s32 1, %s8
  %s11 = scalar_select 0, %s10, %s8
  %12 = sst [smem:[#allocation2]] %s2
  %13 = sst [smem:[#allocation3]] %s6
  $region1: #{tpu_custom_call.1} parent=0
    #allocation4 [shape = 'u8[8192]{0}', space=vmem, size = 0x2000, scoped, tag = 'input window, operand 0, single buffered']
    #allocation5 [shape = 's32[1]{0}', space=sflag, size = 0x4, scoped, tag = 'scoped memory for tpu_custom_call.1']
    #allocation6 [shape = 's32[1]{0}', space=sflag, size = 0x4, scoped, tag = 'scoped memory for tpu_custom_call.1']
    #allocation7 [shape = 's32[1]{0}', space=sflag, size = 0x4, scoped, tag = 'scoped memory for tpu_custom_call.1']
    #allocation8 [shape = 'u8[512]{0}', space=smem, size = 0x200, scoped, tag = 'input window, operand 1, single buffered']
    #allocation9 [shape = 'u8[65536]{0}', space=vmem, size = 0x10000, scoped, tag = 'input window, operand 3, single buffered']
    #allocation10 [shape = 's32[1]{0}', space=sflag, size = 0x4, scoped, tag = 'scoped memory for tpu_custom_call.1']
    #allocation11 [shape = 'u8[1024]{0}', space=vmem, size = 0x400, scoped, tag = 'output window, operand 0, single buffered']
    %14 = vsyncpa [#allocation5], 0
    %15 = vsyncpa [#allocation7], 0
    %16 = vsyncpa [#allocation10], 0
    %17 = vsyncpa [#allocation6], 0
    // Predicated region
    $region2: #{tpu_custom_call.1} parent=1 // pred_check
      _
    $region3: #{tpu_custom_call.1} parent=1 // pred_check_branch
      %19 = sbr.rel (0) target = $region5
    $region4: #{tpu_custom_call.1} parent=1 // pred_region
      %s21 = ssub.s32 256, 256
      %22 = vsyncadd [#allocation5], %s21
      %s23 = sshll.u32 [#allocation4], 4
      %s24 = int_to_ptr.vmem [resolvable:$true] %s23
      %29 = dma.hbm_to_vmem [thread:$0]  %s0, 256, %s24, [#allocation5], 128, 128, 8
    $region5: #{tpu_custom_call.1} parent=1 // pred_fallthru
      _
    // Predicated region
    $region6: #{tpu_custom_call.1} parent=1 // pred_check
      _
    $region7: #{tpu_custom_call.1} parent=1 // pred_check_branch
      %31 = sbr.rel (0) target = $region9
    $region8: #{tpu_custom_call.1} parent=1 // pred_region
      %s33 = ssub.s32 16, 16
      %34 = vsyncadd [#allocation7], %s33
      %s36 = sshll.u32 %s1, 4
      %s37 = int_to_ptr.vmem [resolvable:$true] %s36
      %39 = dma.vmem_to_smem %s37, 16, [#allocation8], [#allocation7]
    $region9: #{tpu_custom_call.1} parent=1 // pred_fallthru
      _
    // Predicated region
    $region10: #{tpu_custom_call.1} parent=1 // pred_check
      _
    $region11: #{tpu_custom_call.1} parent=1 // pred_check_branch
      %41 = sbr.rel (0) target = $region13
    $region12: #{tpu_custom_call.1} parent=1 // pred_region
      _
    $region13: #{tpu_custom_call.1} parent=1 // pred_fallthru
      _
    // Predicated region
    $region14: #{tpu_custom_call.1} parent=1 // pred_check
      _
    $region15: #{tpu_custom_call.1} parent=1 // pred_check_branch
      %43 = sbr.rel (0) target = $region17
    $region16: #{tpu_custom_call.1} parent=1 // pred_region
      %s45 = ssub.s32 2048, 2048
      %46 = vsyncadd [#allocation10], %s45
      %s47 = sshll.u32 [#allocation9], 4
      %s48 = int_to_ptr.vmem [resolvable:$true] %s47
      %53 = dma.hbm_to_vmem [thread:$0]  %s3, 2048, %s48, [#allocation10], 64, 64, 4
    $region17: #{tpu_custom_call.1} parent=1 // pred_fallthru
      _
    // Predicated region
    $region18: #{tpu_custom_call.1} parent=1 // pred_check
      _
    $region19: #{tpu_custom_call.1} parent=1 // pred_check_branch
      %55 = sbr.rel (0) target = $region21
    $region20: #{tpu_custom_call.1} parent=1 // pred_region
      _
    $region21: #{tpu_custom_call.1} parent=1 // pred_fallthru
      _
    // Predicated region
    $region22: #{tpu_custom_call.1} parent=1 // pred_check
      _
    $region23: #{tpu_custom_call.1} parent=1 // pred_check_branch
      %57 = sbr.rel (0) target = $region25
    $region24: #{tpu_custom_call.1} parent=1 // pred_region
      _
    $region25: #{tpu_custom_call.1} parent=1 // pred_fallthru
      _
    // Predicated region
    $region26: #{tpu_custom_call.1} parent=1 // pred_check
      _
    $region27: #{tpu_custom_call.1} parent=1 // pred_check_branch
      %59 = sbr.rel (0) target = $region29
    $region28: #{tpu_custom_call.1} parent=1 // pred_region
      _
    $region29: #{tpu_custom_call.1} parent=1 // pred_fallthru
      _
    // Predicated region
    $region30: #{tpu_custom_call.1} parent=1 // pred_check
      _
    $region31: #{tpu_custom_call.1} parent=1 // pred_check_branch
      %61 = sbr.rel (0) target = $region33
    $region32: #{tpu_custom_call.1} parent=1 // pred_region
      %62 = dma.done [#allocation5], 256
    $region33: #{tpu_custom_call.1} parent=1 // pred_fallthru
      _
    // Predicated region
    $region34: #{tpu_custom_call.1} parent=1 // pred_check
      _
    $region35: #{tpu_custom_call.1} parent=1 // pred_check_branch
      %64 = sbr.rel (0) target = $region37
    $region36: #{tpu_custom_call.1} parent=1 // pred_region
      %65 = dma.done [#allocation7], 16
    $region37: #{tpu_custom_call.1} parent=1 // pred_fallthru
      _
    // Predicated region
    $region38: #{tpu_custom_call.1} parent=1 // pred_check
      _
    $region39: #{tpu_custom_call.1} parent=1 // pred_check_branch
      %67 = sbr.rel (0) target = $region41
    $region40: #{tpu_custom_call.1} parent=1 // pred_region
      %68 = dma.done [#allocation10], 2048
    $region41: #{tpu_custom_call.1} parent=1 // pred_fallthru
      _
    %69 = sfence
    %v71 = vld [vmem:[#allocation4] ss:$4 sm:$0x3]
    %s72 = scalar_lea.vmem [#allocation4], 8
    %v73 = vld [vmem:[%s72] ss:$4 sm:$0x3]
    %s74 = sld [smem:[#allocation8]]
    %v75 = vstv %s74
    %v76 = vmul.f32 %v71, %v75
    %v77 = vmul.f32 %v73, %v75
    %s78 = scalar_lea.vmem [#allocation4], 1
    %v79 = vld [vmem:[%s78] ss:$4 sm:$0x3]
    %s80 = scalar_lea.vmem [#allocation4], 9
    %v81 = vld [vmem:[%s80] ss:$4 sm:$0x3]
    %s82 = sld [smem:[#allocation8 + $0x1]]
    %v83 = vstv %s82
    %v84 = vmul.f32 %v79, %v83
    %v85 = vmul.f32 %v81, %v83
    %v86 = vadd.f32 %v76, %v84
    %v87 = vadd.f32 %v77, %v85
    %s88 = scalar_lea.vmem [#allocation4], 2
    %v89 = vld [vmem:[%s88] ss:$4 sm:$0x3]
    %s90 = scalar_lea.vmem [#allocation4], 10
    %v91 = vld [vmem:[%s90] ss:$4 sm:$0x3]
    %s92 = sld [smem:[#allocation8 + $0x2]]
    %v93 = vstv %s92
    %v94 = vmul.f32 %v89, %v93
    %v95 = vmul.f32 %v91, %v93
    %v96 = vadd.f32 %v86, %v94
    %v97 = vadd.f32 %v87, %v95
    %s98 = scalar_lea.vmem [#allocation4], 3
    %v99 = vld [vmem:[%s98] ss:$4 sm:$0x3]
    %s100 = scalar_lea.vmem [#allocation4], 11
    %v101 = vld [vmem:[%s100] ss:$4 sm:$0x3]
    %s102 = sld [smem:[#allocation8 + $0x3]]
    %v103 = vstv %s102
    %v104 = vmul.f32 %v99, %v103
    %v105 = vmul.f32 %v101, %v103
    %v106 = vadd.f32 %v96, %v104
    %v107 = vadd.f32 %v97, %v105
    %s108 = sld [smem:[#allocation2]]
    %v109 = vstv %s108
    %v110 = vadd.f32 %v106, %v109
    %v111 = vadd.f32 %v107, %v109
    %v112 = vmax.f32 %v110, 0.0
    %v113 = vmax.f32 %v111, 0.0
    %v116 = vlaneseq
    %v117 = vshrl.u32 %v116, 7
    %v118 = vsub.s32 0, %v117
    %v119 = vrot.slane %v112, %v118
    %v120 = vlaneseq
    %v121 = vshrl.u32 %v120, 7
    %v122 = vsub.s32 1, %v121
    %v123 = vrot.slane %v112, %v122
    %v124 = vlaneseq
    %v125 = vshrl.u32 %v124, 7
    %v126 = vsub.s32 0, %v125
    %v127 = vrot.slane %v113, %v126
    %v128 = vlaneseq
    %v129 = vshrl.u32 %v128, 7
    %v130 = vsub.s32 1, %v129
    %v131 = vrot.slane %v113, %v130
    %v136 = vpack.c.bf16 %v119, %v119
    %v137 = vpack.c.bf16 %v123, %v123
    %v138 = vpack.c.bf16 %v127, %v127
    %v139 = vpack.c.bf16 %v131, %v131
    %v140 = vld [vmem:[#allocation9] sm:$0xf]
    %v141 = vld [vmem:[#allocation9 + $0x4] sm:$0xf]
    %v142 = vld [vmem:[#allocation9 + $0x8] sm:$0xf]
    %v143 = vld [vmem:[#allocation9 + $0xc] sm:$0xf]
    %v144 = vld [vmem:[#allocation9 + $0x10] sm:$0xf]
    %v145 = vld [vmem:[#allocation9 + $0x14] sm:$0xf]
    %v146 = vld [vmem:[#allocation9 + $0x18] sm:$0xf]
    %v147 = vld [vmem:[#allocation9 + $0x1c] sm:$0xf]
    %v148 = vld [vmem:[#allocation9 + $0x20] sm:$0xf]
    %v149 = vld [vmem:[#allocation9 + $0x24] sm:$0xf]
    %v150 = vld [vmem:[#allocation9 + $0x28] sm:$0xf]
    %v151 = vld [vmem:[#allocation9 + $0x2c] sm:$0xf]
    %v152 = vld [vmem:[#allocation9 + $0x30] sm:$0xf]
    %v153 = vld [vmem:[#allocation9 + $0x34] sm:$0xf]
    %v154 = vld [vmem:[#allocation9 + $0x38] sm:$0xf]
    %v155 = vld [vmem:[#allocation9 + $0x3c] sm:$0xf]
    %v156 = vld [vmem:[#allocation9 + $0x40] sm:$0xf]
    %v157 = vld [vmem:[#allocation9 + $0x44] sm:$0xf]
    %v158 = vld [vmem:[#allocation9 + $0x48] sm:$0xf]
    %v159 = vld [vmem:[#allocation9 + $0x4c] sm:$0xf]
    %v160 = vld [vmem:[#allocation9 + $0x50] sm:$0xf]
    %v161 = vld [vmem:[#allocation9 + $0x54] sm:$0xf]
    %v162 = vld [vmem:[#allocation9 + $0x58] sm:$0xf]
    %v163 = vld [vmem:[#allocation9 + $0x5c] sm:$0xf]
    %v164 = vld [vmem:[#allocation9 + $0x60] sm:$0xf]
    %v165 = vld [vmem:[#allocation9 + $0x64] sm:$0xf]
    %v166 = vld [vmem:[#allocation9 + $0x68] sm:$0xf]
    %v167 = vld [vmem:[#allocation9 + $0x6c] sm:$0xf]
    %v168 = vld [vmem:[#allocation9 + $0x70] sm:$0xf]
    %v169 = vld [vmem:[#allocation9 + $0x74] sm:$0xf]
    %v170 = vld [vmem:[#allocation9 + $0x78] sm:$0xf]
    %v171 = vld [vmem:[#allocation9 + $0x7c] sm:$0xf]
    %v172 = vld [vmem:[%s4] sm:$0x1]
    %v174 = vlaneseq
    %v175 = vshrl.u32 %v174, 7
    %v176 = vsub.s32 0, %v175
    %v177 = vrot.slane %v172, %v176
    %v183 = vunpack.c.l.b16 %v136
    %v184 = vunpack.c.l.b16 %v137
    %v185 = vunpack.c.l.b16 %v138
    %v186 = vunpack.c.l.b16 %v139
    %v187 = vrot.slane %v185, 7
    %vm188 = vcmask 1041409
    %v189 = vsel %vm188, %v187, %v183
    %v190 = vrot.slane %v186, 7
    %v191 = vsel %vm188, %v190, %v184
    %v192 = vpack.c.b16 %v189, %v189
    %v193 = vpack.c.b16 %v191, %v191
    %v228 = vunpack.c.l.b16 %v140
    %v229 = vunpack.c.l.b16 %v141
    %v230 = vunpack.c.l.b16 %v142
    %v231 = vunpack.c.l.b16 %v143
    %v232 = vunpack.c.l.b16 %v144
    %v233 = vunpack.c.l.b16 %v145
    %v234 = vunpack.c.l.b16 %v146
    %v235 = vunpack.c.l.b16 %v147
    %v236 = vunpack.c.l.b16 %v148
    %v237 = vunpack.c.l.b16 %v149
    %v238 = vunpack.c.l.b16 %v150
    %v239 = vunpack.c.l.b16 %v151
    %v240 = vunpack.c.l.b16 %v152
    %v241 = vunpack.c.l.b16 %v153
    %v242 = vunpack.c.l.b16 %v154
    %v243 = vunpack.c.l.b16 %v155
    %v244 = vunpack.c.l.b16 %v156
    %v245 = vunpack.c.l.b16 %v157
    %v246 = vunpack.c.l.b16 %v158
    %v247 = vunpack.c.l.b16 %v159
    %v248 = vunpack.c.l.b16 %v160
    %v249 = vunpack.c.l.b16 %v161
    %v250 = vunpack.c.l.b16 %v162
    %v251 = vunpack.c.l.b16 %v163
    %v252 = vunpack.c.l.b16 %v164
    %v253 = vunpack.c.l.b16 %v165
    %v254 = vunpack.c.l.b16 %v166
    %v255 = vunpack.c.l.b16 %v167
    %v256 = vunpack.c.l.b16 %v168
    %v257 = vunpack.c.l.b16 %v169
    %v258 = vunpack.c.l.b16 %v170
    %v259 = vunpack.c.l.b16 %v171
    %v260 = vpack.c.b16 %v229, %v228
    %v261 = vpack.c.b16 %v231, %v230
    %v262 = vpack.c.b16 %v233, %v232
    %v263 = vpack.c.b16 %v235, %v234
    %v264 = vpack.c.b16 %v237, %v236
    %v265 = vpack.c.b16 %v239, %v238
    %v266 = vpack.c.b16 %v241, %v240
    %v267 = vpack.c.b16 %v243, %v242
    %v268 = vpack.c.b16 %v245, %v244
    %v269 = vpack.c.b16 %v247, %v246
    %v270 = vpack.c.b16 %v249, %v248
    %v271 = vpack.c.b16 %v251, %v250
    %v272 = vpack.c.b16 %v253, %v252
    %v273 = vpack.c.b16 %v255, %v254
    %v274 = vpack.c.b16 %v257, %v256
    %v275 = vpack.c.b16 %v259, %v258
    %292 = vmatprep.subr.bf16.mxu0 0
    %293 = vmatpush1.bf16.msra.mxu0 %v260
    %294 = vmatprep.subr.bf16.mxu0 0
    %295 = vmatpush1.bf16.msra.mxu0 %v261
    %296 = vmatprep.subr.bf16.mxu0 0
    %297 = vmatpush1.bf16.msra.mxu0 %v262
    %298 = vmatprep.subr.bf16.mxu0 0
    %299 = vmatpush1.bf16.msra.mxu0 %v263
    %300 = vmatprep.subr.bf16.mxu0 0
    %301 = vmatpush1.bf16.msra.mxu0 %v264
    %302 = vmatprep.subr.bf16.mxu0 0
    %303 = vmatpush1.bf16.msra.mxu0 %v265
    %304 = vmatprep.subr.bf16.mxu0 0
    %305 = vmatpush1.bf16.msra.mxu0 %v266
    %306 = vmatprep.subr.bf16.mxu0 0
    %307 = vmatpush1.bf16.msra.mxu0 %v267
    %308 = vmatprep.subr.bf16.mxu0 0
    %309 = vmatpush1.bf16.msra.mxu0 %v268
    %310 = vmatprep.subr.bf16.mxu0 0
    %311 = vmatpush1.bf16.msra.mxu0 %v269
    %312 = vmatprep.subr.bf16.mxu0 0
    %313 = vmatpush1.bf16.msra.mxu0 %v270
    %314 = vmatprep.subr.bf16.mxu0 0
    %315 = vmatpush1.bf16.msra.mxu0 %v271
    %316 = vmatprep.subr.bf16.mxu0 0
    %317 = vmatpush1.bf16.msra.mxu0 %v272
    %318 = vmatprep.subr.bf16.mxu0 0
    %319 = vmatpush1.bf16.msra.mxu0 %v273
    %320 = vmatprep.subr.bf16.mxu0 0
    %321 = vmatpush1.bf16.msra.mxu0 %v274
    %322 = vmatprep.subr.bf16.mxu0 0
    %323 = vmatpush1.bf16.msra.mxu0 %v275
    %324 = vmatprep.mubr.bf16.mxu0 %v193
    %325 = vmatmul.mubr.bf16.gmra.mrb[0].mxu0 %v192
    %v326 = vpop.f32.mrb[0].mxu0
    %v327 = vadd.f32 %v177, %v326
    %v328 = vpop.f32.mrb[0].mxu0
    %v329 = vpop.f32.mrb[0].mxu0
    %v330 = vpop.f32.mrb[0].mxu0
    %331 = vdwg.mxu0
    %v332 = vmax.f32 %v327, 0.0
    %v333 = vld [vmem:[%s5] sm:$0x1]
    %v335 = vlaneseq
    %v336 = vshrl.u32 %v335, 7
    %v337 = vsub.s32 0, %v336
    %v338 = vrot.slane %v333, %v337
    %v340 = vmul.f32 %v332, %v338
    %vm341 = vcmask 1041408
    %v342 = vsel %vm341, %v340, 0.0
    %343 = vadd.xlane.f32.xlu0 %v342
    %v344 = vpop.xlane.xlu0 %343
    %s345 = sld [smem:[#allocation3]]
    %v346 = vstv %s345
    %v347 = vadd.f32 %v344, %v346
    %v348 = vtanh.pop %v347
    %349 = vst [vmem:[#allocation11] sm:$0x3] %v348
    // Predicated region
    $region42: #{tpu_custom_call.1} parent=1 // pred_check
      _
    $region43: #{tpu_custom_call.1} parent=1 // pred_check_branch
      %351 = sbr.rel (0) target = $region45
    $region44: #{tpu_custom_call.1} parent=1 // pred_region
      %s353 = ssub.s32 32, 32
      %354 = vsyncadd [#allocation6], %s353
      %s356 = sshll.u32 [#allocation11], 4
      %s357 = int_to_ptr.vmem [resolvable:$true] %s356
      %359 = dma.vmem_to_hbm [thread:$0]  %s357, 32, %s7, [#allocation6]
    $region45: #{tpu_custom_call.1} parent=1 // pred_fallthru
      _
    // Predicated region
    $region46: #{tpu_custom_call.1} parent=1 // pred_check
      _
    $region47: #{tpu_custom_call.1} parent=1 // pred_check_branch
      %361 = sbr.rel (0) target = $region49
    $region48: #{tpu_custom_call.1} parent=1 // pred_region
      %362 = dma.done [#allocation6], 32
    $region49: #{tpu_custom_call.1} parent=1 // pred_fallthru
      _
    %363 = vsyncpa [#allocation5], 1
    %364 = vsyncpa [#allocation10], 1
    %365 = vsyncpa [#allocation6], 1
    %366 = vsyncpa [#allocation7], 1

</llo_original>
